<compile_context>
chip_gen: v7x
topology: tpu7x:2x2x1
jax: 0.10.0
libtpu: 0.0.40
codegen_flags: <defaults>
</compile_context>

<pallas_src>
import jax
import jax.numpy as jnp
from jax import lax
from jax.experimental import pallas as pl
from jax.experimental.pallas import tpu as pltpu

BATCH_SIZE = 2          # cfg.BATCH_SIZE
SEQ_LEN = 8
VOCAB = 128             # lane axis (multiple of 128)

MAX_TILE_ROWS = 1024    # v6e guidance: 512-1024-row tiles; upper cap for the sweep


def _tile_rows(n_rows, vocab, vmem_budget_bytes=8 << 20):
    # Keep the double-buffered logits tile well under the scoped VMEM limit
    # (v7x: 64 MiB VMEM, 32 MiB default scoped limit -> leave plenty of headroom).
    by_vmem = (vmem_budget_bytes // (2 * vocab * 4)) // 8 * 8
    tr = max(8, min(n_rows, MAX_TILE_ROWS, by_vmem))
    while n_rows % tr:          # n_rows is a multiple of 8, so this terminates at >= 8
        tr -= 8
    return tr


def latex_loss_kernel(tok_ref, logits_ref, out_ref):
    # tok_ref:    (N,)     int32 in SMEM (scalar-prefetched, full array)
    # logits_ref: (TR, V)  f32   in VMEM (rows [i*TR, (i+1)*TR) of the input)
    # out_ref:    (1, 1)   f32   in SMEM (this tile's partial sum, pre-scaled)
    i = pl.program_id(0)
    tile_rows, vocab = logits_ref.shape
    base = i * tile_rows
    # Hoisted out of the row loop (don't rebuild the iota per iteration).
    col = lax.broadcasted_iota(jnp.int32, (1, vocab), 1)

    def per_row(r, acc):
        tok = tok_ref[base + r]                              # cheap SMEM scalar read
        row = logits_ref[pl.ds(r, 1), :]                     # (1, V)
        picked = jnp.sum(jnp.where(col == tok, row, 0.0))    # masked lane reduce (VPU/XLU)
        return acc - jnp.log(picked)

    acc = lax.fori_loop(0, tile_rows, per_row,
                        jnp.zeros((), jnp.float32), unroll=True)
    # Fused `/ BATCH_SIZE` (compile-time constant scale).
    out_ref[0, 0] = acc * (1.0 / BATCH_SIZE)


def latex_loss(logits, tokens):
    """logits: (N, V) float32 positive probabilities; tokens: (N,) or (N, 1) int32."""
    n_rows, vocab = logits.shape
    assert n_rows % 8 == 0 and vocab % 128 == 0, "block must be sublane/lane aligned"
    tokens = tokens.reshape(n_rows).astype(jnp.int32)        # 1-D for SMEM prefetch

    tr = _tile_rows(n_rows, vocab)
    num_tiles = n_rows // tr

    partials = pl.pallas_call(
        latex_loss_kernel,
        out_shape=jax.ShapeDtypeStruct((num_tiles, 1), jnp.float32),
        grid_spec=pltpu.PrefetchScalarGridSpec(
            num_scalar_prefetch=1,
            grid=(num_tiles,),
            in_specs=[pl.BlockSpec((tr, vocab), lambda i, tok: (i, 0))],
            out_specs=pl.BlockSpec((1, 1), lambda i, tok: (i, 0),
                                   memory_space=pltpu.SMEM),
        ),
        compiler_params=pltpu.CompilerParams(
            dimension_semantics=("parallel",)),
    )(tokens, logits)

    if num_tiles == 1:
        return partials[0, 0]
    # Per-tile partials are already scaled by 1/BATCH_SIZE inside the kernel.
    return jnp.sum(partials)


if __name__ == "__main__":
    key = jax.random.PRNGKey(0)
    k1, k2 = jax.random.split(key)

    N = BATCH_SIZE * SEQ_LEN  # 16 rows
    # Positive "probabilities" (softmax of random values) so log() is valid,
    # mirroring the expected input to LatexLoss (which gathers then takes -log).
    raw = jax.random.normal(k1, (N, VOCAB), dtype=jnp.float32)
    probs = jax.nn.softmax(raw, axis=-1)
    tokens = jax.random.randint(k2, (N, 1), 0, VOCAB, dtype=jnp.int32)

    loss = jax.jit(latex_loss)(probs, tokens)
    loss = jax.block_until_ready(loss)

    # reference check (plain JAX)
    ref = jnp.sum(-jnp.log(jnp.take_along_axis(probs, tokens, axis=1))) / BATCH_SIZE
    assert jnp.allclose(loss, ref, rtol=1e-5, atol=1e-5), (loss, ref)

    print("KERNEL_OK")
</pallas_src>

<mosaic_0001>
module attributes {stable_mosaic.version = 11 : i64} {
  func.func @latex_loss_kernel(%arg0: i32, %arg1: memref<16xi32, #tpu.memory_space<smem>>, %arg2: memref<16x128xf32, #tpu.memory_space<vmem>>, %arg3: memref<1x1xf32, #tpu.memory_space<smem>>) attributes {dimension_semantics = [#tpu.dimension_semantics<parallel>], iteration_bounds = array<i64: 1>, scalar_prefetch = 1 : i64, scratch_operands = 0 : i64, tpu.core_type = #tpu.core_type<tc>, window_params = [{transform_indices = @transform_0, window_bounds = array<i64: 16, 128>}, {transform_indices = @transform_1, window_bounds = array<i64: 1, 1>}]} {
    %c16_i32 = arith.constant 16 : i32
    %0 = arith.muli %arg0, %c16_i32 : i32
    %1 = tpu.iota {dimensions = array<i32: 1>} : vector<1x128xi32>
    %cst = arith.constant 0.000000e+00 : f32
    %c0_i32 = arith.constant 0 : i32
    %2 = arith.addi %0, %c0_i32 : i32
    %3 = arith.index_cast %2 : i32 to index
    %4 = memref.load %arg1[%3] : memref<16xi32, #tpu.memory_space<smem>>
    %5 = arith.index_cast %c0_i32 : i32 to index
    %c0 = arith.constant 0 : index
    %6 = vector.load %arg2[%5, %c0] : memref<16x128xf32, #tpu.memory_space<vmem>>, vector<1x128xf32>
    %7 = vector.broadcast %4 : i32 to vector<1x128xi32>
    %8 = arith.cmpi eq, %1, %7 : vector<1x128xi32>
    %cst_0 = arith.constant 0.000000e+00 : f32
    %9 = vector.broadcast %cst_0 : f32 to vector<1x128xf32>
    %10 = arith.select %8, %6, %9 : vector<1x128xi1>, vector<1x128xf32>
    %11 = vector.shape_cast %10 : vector<1x128xf32> to vector<1x1x128xf32>
    %cst_1 = arith.constant dense<0.000000e+00> : vector<1xf32>
    %12 = vector.multi_reduction <add>, %11, %cst_1 [1, 2] : vector<1x1x128xf32> to vector<1xf32>
    %13 = vector.shape_cast %12 : vector<1xf32> to vector<1x1x1xf32>
    %14 = vector.extract %13[0, 0, 0] : f32 from vector<1x1x1xf32>
    %15 = math.log %14 : f32
    %16 = arith.subf %cst, %15 : f32
    %c1_i32 = arith.constant 1 : i32
    %17 = arith.addi %0, %c1_i32 : i32
    %18 = arith.index_cast %17 : i32 to index
    %19 = memref.load %arg1[%18] : memref<16xi32, #tpu.memory_space<smem>>
    %20 = arith.index_cast %c1_i32 : i32 to index
    %c0_2 = arith.constant 0 : index
    %21 = vector.load %arg2[%20, %c0_2] : memref<16x128xf32, #tpu.memory_space<vmem>>, vector<1x128xf32>
    %22 = vector.broadcast %19 : i32 to vector<1x128xi32>
    %23 = arith.cmpi eq, %1, %22 : vector<1x128xi32>
    %cst_3 = arith.constant 0.000000e+00 : f32
    %24 = vector.broadcast %cst_3 : f32 to vector<1x128xf32>
    %25 = arith.select %23, %21, %24 : vector<1x128xi1>, vector<1x128xf32>
    %26 = vector.shape_cast %25 : vector<1x128xf32> to vector<1x1x128xf32>
    %cst_4 = arith.constant dense<0.000000e+00> : vector<1xf32>
    %27 = vector.multi_reduction <add>, %26, %cst_4 [1, 2] : vector<1x1x128xf32> to vector<1xf32>
    %28 = vector.shape_cast %27 : vector<1xf32> to vector<1x1x1xf32>
    %29 = vector.extract %28[0, 0, 0] : f32 from vector<1x1x1xf32>
    %30 = math.log %29 : f32
    %31 = arith.subf %16, %30 : f32
    %c2_i32 = arith.constant 2 : i32
    %32 = arith.addi %0, %c2_i32 : i32
    %33 = arith.index_cast %32 : i32 to index
    %34 = memref.load %arg1[%33] : memref<16xi32, #tpu.memory_space<smem>>
    %35 = arith.index_cast %c2_i32 : i32 to index
    %c0_5 = arith.constant 0 : index
    %36 = vector.load %arg2[%35, %c0_5] : memref<16x128xf32, #tpu.memory_space<vmem>>, vector<1x128xf32>
    %37 = vector.broadcast %34 : i32 to vector<1x128xi32>
    %38 = arith.cmpi eq, %1, %37 : vector<1x128xi32>
    %cst_6 = arith.constant 0.000000e+00 : f32
    %39 = vector.broadcast %cst_6 : f32 to vector<1x128xf32>
    %40 = arith.select %38, %36, %39 : vector<1x128xi1>, vector<1x128xf32>
    %41 = vector.shape_cast %40 : vector<1x128xf32> to vector<1x1x128xf32>
    %cst_7 = arith.constant dense<0.000000e+00> : vector<1xf32>
    %42 = vector.multi_reduction <add>, %41, %cst_7 [1, 2] : vector<1x1x128xf32> to vector<1xf32>
    %43 = vector.shape_cast %42 : vector<1xf32> to vector<1x1x1xf32>
    %44 = vector.extract %43[0, 0, 0] : f32 from vector<1x1x1xf32>
    %45 = math.log %44 : f32
    %46 = arith.subf %31, %45 : f32
    %c3_i32 = arith.constant 3 : i32
    %47 = arith.addi %0, %c3_i32 : i32
    %48 = arith.index_cast %47 : i32 to index
    %49 = memref.load %arg1[%48] : memref<16xi32, #tpu.memory_space<smem>>
    %50 = arith.index_cast %c3_i32 : i32 to index
    %c0_8 = arith.constant 0 : index
    %51 = vector.load %arg2[%50, %c0_8] : memref<16x128xf32, #tpu.memory_space<vmem>>, vector<1x128xf32>
    %52 = vector.broadcast %49 : i32 to vector<1x128xi32>
    %53 = arith.cmpi eq, %1, %52 : vector<1x128xi32>
    %cst_9 = arith.constant 0.000000e+00 : f32
    %54 = vector.broadcast %cst_9 : f32 to vector<1x128xf32>
    %55 = arith.select %53, %51, %54 : vector<1x128xi1>, vector<1x128xf32>
    %56 = vector.shape_cast %55 : vector<1x128xf32> to vector<1x1x128xf32>
    %cst_10 = arith.constant dense<0.000000e+00> : vector<1xf32>
    %57 = vector.multi_reduction <add>, %56, %cst_10 [1, 2] : vector<1x1x128xf32> to vector<1xf32>
    %58 = vector.shape_cast %57 : vector<1xf32> to vector<1x1x1xf32>
    %59 = vector.extract %58[0, 0, 0] : f32 from vector<1x1x1xf32>
    %60 = math.log %59 : f32
    %61 = arith.subf %46, %60 : f32
    %c4_i32 = arith.constant 4 : i32
    %62 = arith.addi %0, %c4_i32 : i32
    %63 = arith.index_cast %62 : i32 to index
    %64 = memref.load %arg1[%63] : memref<16xi32, #tpu.memory_space<smem>>
    %65 = arith.index_cast %c4_i32 : i32 to index
    %c0_11 = arith.constant 0 : index
    %66 = vector.load %arg2[%65, %c0_11] : memref<16x128xf32, #tpu.memory_space<vmem>>, vector<1x128xf32>
    %67 = vector.broadcast %64 : i32 to vector<1x128xi32>
    %68 = arith.cmpi eq, %1, %67 : vector<1x128xi32>
    %cst_12 = arith.constant 0.000000e+00 : f32
    %69 = vector.broadcast %cst_12 : f32 to vector<1x128xf32>
    %70 = arith.select %68, %66, %69 : vector<1x128xi1>, vector<1x128xf32>
    %71 = vector.shape_cast %70 : vector<1x128xf32> to vector<1x1x128xf32>
    %cst_13 = arith.constant dense<0.000000e+00> : vector<1xf32>
    %72 = vector.multi_reduction <add>, %71, %cst_13 [1, 2] : vector<1x1x128xf32> to vector<1xf32>
    %73 = vector.shape_cast %72 : vector<1xf32> to vector<1x1x1xf32>
    %74 = vector.extract %73[0, 0, 0] : f32 from vector<1x1x1xf32>
    %75 = math.log %74 : f32
    %76 = arith.subf %61, %75 : f32
    %c5_i32 = arith.constant 5 : i32
    %77 = arith.addi %0, %c5_i32 : i32
    %78 = arith.index_cast %77 : i32 to index
    %79 = memref.load %arg1[%78] : memref<16xi32, #tpu.memory_space<smem>>
    %80 = arith.index_cast %c5_i32 : i32 to index
    %c0_14 = arith.constant 0 : index
    %81 = vector.load %arg2[%80, %c0_14] : memref<16x128xf32, #tpu.memory_space<vmem>>, vector<1x128xf32>
    %82 = vector.broadcast %79 : i32 to vector<1x128xi32>
    %83 = arith.cmpi eq, %1, %82 : vector<1x128xi32>
    %cst_15 = arith.constant 0.000000e+00 : f32
    %84 = vector.broadcast %cst_15 : f32 to vector<1x128xf32>
    %85 = arith.select %83, %81, %84 : vector<1x128xi1>, vector<1x128xf32>
    %86 = vector.shape_cast %85 : vector<1x128xf32> to vector<1x1x128xf32>
    %cst_16 = arith.constant dense<0.000000e+00> : vector<1xf32>
    %87 = vector.multi_reduction <add>, %86, %cst_16 [1, 2] : vector<1x1x128xf32> to vector<1xf32>
    %88 = vector.shape_cast %87 : vector<1xf32> to vector<1x1x1xf32>
    %89 = vector.extract %88[0, 0, 0] : f32 from vector<1x1x1xf32>
    %90 = math.log %89 : f32
    %91 = arith.subf %76, %90 : f32
    %c6_i32 = arith.constant 6 : i32
    %92 = arith.addi %0, %c6_i32 : i32
    %93 = arith.index_cast %92 : i32 to index
    %94 = memref.load %arg1[%93] : memref<16xi32, #tpu.memory_space<smem>>
    %95 = arith.index_cast %c6_i32 : i32 to index
    %c0_17 = arith.constant 0 : index
    %96 = vector.load %arg2[%95, %c0_17] : memref<16x128xf32, #tpu.memory_space<vmem>>, vector<1x128xf32>
    %97 = vector.broadcast %94 : i32 to vector<1x128xi32>
    %98 = arith.cmpi eq, %1, %97 : vector<1x128xi32>
    %cst_18 = arith.constant 0.000000e+00 : f32
    %99 = vector.broadcast %cst_18 : f32 to vector<1x128xf32>
    %100 = arith.select %98, %96, %99 : vector<1x128xi1>, vector<1x128xf32>
    %101 = vector.shape_cast %100 : vector<1x128xf32> to vector<1x1x128xf32>
    %cst_19 = arith.constant dense<0.000000e+00> : vector<1xf32>
    %102 = vector.multi_reduction <add>, %101, %cst_19 [1, 2] : vector<1x1x128xf32> to vector<1xf32>
    %103 = vector.shape_cast %102 : vector<1xf32> to vector<1x1x1xf32>
    %104 = vector.extract %103[0, 0, 0] : f32 from vector<1x1x1xf32>
    %105 = math.log %104 : f32
    %106 = arith.subf %91, %105 : f32
    %c7_i32 = arith.constant 7 : i32
    %107 = arith.addi %0, %c7_i32 : i32
    %108 = arith.index_cast %107 : i32 to index
    %109 = memref.load %arg1[%108] : memref<16xi32, #tpu.memory_space<smem>>
    %110 = arith.index_cast %c7_i32 : i32 to index
    %c0_20 = arith.constant 0 : index
    %111 = vector.load %arg2[%110, %c0_20] : memref<16x128xf32, #tpu.memory_space<vmem>>, vector<1x128xf32>
    %112 = vector.broadcast %109 : i32 to vector<1x128xi32>
    %113 = arith.cmpi eq, %1, %112 : vector<1x128xi32>
    %cst_21 = arith.constant 0.000000e+00 : f32
    %114 = vector.broadcast %cst_21 : f32 to vector<1x128xf32>
    %115 = arith.select %113, %111, %114 : vector<1x128xi1>, vector<1x128xf32>
    %116 = vector.shape_cast %115 : vector<1x128xf32> to vector<1x1x128xf32>
    %cst_22 = arith.constant dense<0.000000e+00> : vector<1xf32>
    %117 = vector.multi_reduction <add>, %116, %cst_22 [1, 2] : vector<1x1x128xf32> to vector<1xf32>
    %118 = vector.shape_cast %117 : vector<1xf32> to vector<1x1x1xf32>
    %119 = vector.extract %118[0, 0, 0] : f32 from vector<1x1x1xf32>
    %120 = math.log %119 : f32
    %121 = arith.subf %106, %120 : f32
    %c8_i32 = arith.constant 8 : i32
    %122 = arith.addi %0, %c8_i32 : i32
    %123 = arith.index_cast %122 : i32 to index
    %124 = memref.load %arg1[%123] : memref<16xi32, #tpu.memory_space<smem>>
    %125 = arith.index_cast %c8_i32 : i32 to index
    %c0_23 = arith.constant 0 : index
    %126 = vector.load %arg2[%125, %c0_23] : memref<16x128xf32, #tpu.memory_space<vmem>>, vector<1x128xf32>
    %127 = vector.broadcast %124 : i32 to vector<1x128xi32>
    %128 = arith.cmpi eq, %1, %127 : vector<1x128xi32>
    %cst_24 = arith.constant 0.000000e+00 : f32
    %129 = vector.broadcast %cst_24 : f32 to vector<1x128xf32>
    %130 = arith.select %128, %126, %129 : vector<1x128xi1>, vector<1x128xf32>
    %131 = vector.shape_cast %130 : vector<1x128xf32> to vector<1x1x128xf32>
    %cst_25 = arith.constant dense<0.000000e+00> : vector<1xf32>
    %132 = vector.multi_reduction <add>, %131, %cst_25 [1, 2] : vector<1x1x128xf32> to vector<1xf32>
    %133 = vector.shape_cast %132 : vector<1xf32> to vector<1x1x1xf32>
    %134 = vector.extract %133[0, 0, 0] : f32 from vector<1x1x1xf32>
    %135 = math.log %134 : f32
    %136 = arith.subf %121, %135 : f32
    %c9_i32 = arith.constant 9 : i32
    %137 = arith.addi %0, %c9_i32 : i32
    %138 = arith.index_cast %137 : i32 to index
    %139 = memref.load %arg1[%138] : memref<16xi32, #tpu.memory_space<smem>>
    %140 = arith.index_cast %c9_i32 : i32 to index
    %c0_26 = arith.constant 0 : index
    %141 = vector.load %arg2[%140, %c0_26] : memref<16x128xf32, #tpu.memory_space<vmem>>, vector<1x128xf32>
    %142 = vector.broadcast %139 : i32 to vector<1x128xi32>
    %143 = arith.cmpi eq, %1, %142 : vector<1x128xi32>
    %cst_27 = arith.constant 0.000000e+00 : f32
    %144 = vector.broadcast %cst_27 : f32 to vector<1x128xf32>
    %145 = arith.select %143, %141, %144 : vector<1x128xi1>, vector<1x128xf32>
    %146 = vector.shape_cast %145 : vector<1x128xf32> to vector<1x1x128xf32>
    %cst_28 = arith.constant dense<0.000000e+00> : vector<1xf32>
    %147 = vector.multi_reduction <add>, %146, %cst_28 [1, 2] : vector<1x1x128xf32> to vector<1xf32>
    %148 = vector.shape_cast %147 : vector<1xf32> to vector<1x1x1xf32>
    %149 = vector.extract %148[0, 0, 0] : f32 from vector<1x1x1xf32>
    %150 = math.log %149 : f32
    %151 = arith.subf %136, %150 : f32
    %c10_i32 = arith.constant 10 : i32
    %152 = arith.addi %0, %c10_i32 : i32
    %153 = arith.index_cast %152 : i32 to index
    %154 = memref.load %arg1[%153] : memref<16xi32, #tpu.memory_space<smem>>
    %155 = arith.index_cast %c10_i32 : i32 to index
    %c0_29 = arith.constant 0 : index
    %156 = vector.load %arg2[%155, %c0_29] : memref<16x128xf32, #tpu.memory_space<vmem>>, vector<1x128xf32>
    %157 = vector.broadcast %154 : i32 to vector<1x128xi32>
    %158 = arith.cmpi eq, %1, %157 : vector<1x128xi32>
    %cst_30 = arith.constant 0.000000e+00 : f32
    %159 = vector.broadcast %cst_30 : f32 to vector<1x128xf32>
    %160 = arith.select %158, %156, %159 : vector<1x128xi1>, vector<1x128xf32>
    %161 = vector.shape_cast %160 : vector<1x128xf32> to vector<1x1x128xf32>
    %cst_31 = arith.constant dense<0.000000e+00> : vector<1xf32>
    %162 = vector.multi_reduction <add>, %161, %cst_31 [1, 2] : vector<1x1x128xf32> to vector<1xf32>
    %163 = vector.shape_cast %162 : vector<1xf32> to vector<1x1x1xf32>
    %164 = vector.extract %163[0, 0, 0] : f32 from vector<1x1x1xf32>
    %165 = math.log %164 : f32
    %166 = arith.subf %151, %165 : f32
    %c11_i32 = arith.constant 11 : i32
    %167 = arith.addi %0, %c11_i32 : i32
    %168 = arith.index_cast %167 : i32 to index
    %169 = memref.load %arg1[%168] : memref<16xi32, #tpu.memory_space<smem>>
    %170 = arith.index_cast %c11_i32 : i32 to index
    %c0_32 = arith.constant 0 : index
    %171 = vector.load %arg2[%170, %c0_32] : memref<16x128xf32, #tpu.memory_space<vmem>>, vector<1x128xf32>
    %172 = vector.broadcast %169 : i32 to vector<1x128xi32>
    %173 = arith.cmpi eq, %1, %172 : vector<1x128xi32>
    %cst_33 = arith.constant 0.000000e+00 : f32
    %174 = vector.broadcast %cst_33 : f32 to vector<1x128xf32>
    %175 = arith.select %173, %171, %174 : vector<1x128xi1>, vector<1x128xf32>
    %176 = vector.shape_cast %175 : vector<1x128xf32> to vector<1x1x128xf32>
    %cst_34 = arith.constant dense<0.000000e+00> : vector<1xf32>
    %177 = vector.multi_reduction <add>, %176, %cst_34 [1, 2] : vector<1x1x128xf32> to vector<1xf32>
    %178 = vector.shape_cast %177 : vector<1xf32> to vector<1x1x1xf32>
    %179 = vector.extract %178[0, 0, 0] : f32 from vector<1x1x1xf32>
    %180 = math.log %179 : f32
    %181 = arith.subf %166, %180 : f32
    %c12_i32 = arith.constant 12 : i32
    %182 = arith.addi %0, %c12_i32 : i32
    %183 = arith.index_cast %182 : i32 to index
    %184 = memref.load %arg1[%183] : memref<16xi32, #tpu.memory_space<smem>>
    %185 = arith.index_cast %c12_i32 : i32 to index
    %c0_35 = arith.constant 0 : index
    %186 = vector.load %arg2[%185, %c0_35] : memref<16x128xf32, #tpu.memory_space<vmem>>, vector<1x128xf32>
    %187 = vector.broadcast %184 : i32 to vector<1x128xi32>
    %188 = arith.cmpi eq, %1, %187 : vector<1x128xi32>
    %cst_36 = arith.constant 0.000000e+00 : f32
    %189 = vector.broadcast %cst_36 : f32 to vector<1x128xf32>
    %190 = arith.select %188, %186, %189 : vector<1x128xi1>, vector<1x128xf32>
    %191 = vector.shape_cast %190 : vector<1x128xf32> to vector<1x1x128xf32>
    %cst_37 = arith.constant dense<0.000000e+00> : vector<1xf32>
    %192 = vector.multi_reduction <add>, %191, %cst_37 [1, 2] : vector<1x1x128xf32> to vector<1xf32>
    %193 = vector.shape_cast %192 : vector<1xf32> to vector<1x1x1xf32>
    %194 = vector.extract %193[0, 0, 0] : f32 from vector<1x1x1xf32>
    %195 = math.log %194 : f32
    %196 = arith.subf %181, %195 : f32
    %c13_i32 = arith.constant 13 : i32
    %197 = arith.addi %0, %c13_i32 : i32
    %198 = arith.index_cast %197 : i32 to index
    %199 = memref.load %arg1[%198] : memref<16xi32, #tpu.memory_space<smem>>
    %200 = arith.index_cast %c13_i32 : i32 to index
    %c0_38 = arith.constant 0 : index
    %201 = vector.load %arg2[%200, %c0_38] : memref<16x128xf32, #tpu.memory_space<vmem>>, vector<1x128xf32>
    %202 = vector.broadcast %199 : i32 to vector<1x128xi32>
    %203 = arith.cmpi eq, %1, %202 : vector<1x128xi32>
    %cst_39 = arith.constant 0.000000e+00 : f32
    %204 = vector.broadcast %cst_39 : f32 to vector<1x128xf32>
    %205 = arith.select %203, %201, %204 : vector<1x128xi1>, vector<1x128xf32>
    %206 = vector.shape_cast %205 : vector<1x128xf32> to vector<1x1x128xf32>
    %cst_40 = arith.constant dense<0.000000e+00> : vector<1xf32>
    %207 = vector.multi_reduction <add>, %206, %cst_40 [1, 2] : vector<1x1x128xf32> to vector<1xf32>
    %208 = vector.shape_cast %207 : vector<1xf32> to vector<1x1x1xf32>
    %209 = vector.extract %208[0, 0, 0] : f32 from vector<1x1x1xf32>
    %210 = math.log %209 : f32
    %211 = arith.subf %196, %210 : f32
    %c14_i32 = arith.constant 14 : i32
    %212 = arith.addi %0, %c14_i32 : i32
    %213 = arith.index_cast %212 : i32 to index
    %214 = memref.load %arg1[%213] : memref<16xi32, #tpu.memory_space<smem>>
    %215 = arith.index_cast %c14_i32 : i32 to index
    %c0_41 = arith.constant 0 : index
    %216 = vector.load %arg2[%215, %c0_41] : memref<16x128xf32, #tpu.memory_space<vmem>>, vector<1x128xf32>
    %217 = vector.broadcast %214 : i32 to vector<1x128xi32>
    %218 = arith.cmpi eq, %1, %217 : vector<1x128xi32>
    %cst_42 = arith.constant 0.000000e+00 : f32
    %219 = vector.broadcast %cst_42 : f32 to vector<1x128xf32>
    %220 = arith.select %218, %216, %219 : vector<1x128xi1>, vector<1x128xf32>
    %221 = vector.shape_cast %220 : vector<1x128xf32> to vector<1x1x128xf32>
    %cst_43 = arith.constant dense<0.000000e+00> : vector<1xf32>
    %222 = vector.multi_reduction <add>, %221, %cst_43 [1, 2] : vector<1x1x128xf32> to vector<1xf32>
    %223 = vector.shape_cast %222 : vector<1xf32> to vector<1x1x1xf32>
    %224 = vector.extract %223[0, 0, 0] : f32 from vector<1x1x1xf32>
    %225 = math.log %224 : f32
    %226 = arith.subf %211, %225 : f32
    %c15_i32 = arith.constant 15 : i32
    %227 = arith.addi %0, %c15_i32 : i32
    %228 = arith.index_cast %227 : i32 to index
    %229 = memref.load %arg1[%228] : memref<16xi32, #tpu.memory_space<smem>>
    %230 = arith.index_cast %c15_i32 : i32 to index
    %c0_44 = arith.constant 0 : index
    %231 = vector.load %arg2[%230, %c0_44] : memref<16x128xf32, #tpu.memory_space<vmem>>, vector<1x128xf32>
    %232 = vector.broadcast %229 : i32 to vector<1x128xi32>
    %233 = arith.cmpi eq, %1, %232 : vector<1x128xi32>
    %cst_45 = arith.constant 0.000000e+00 : f32
    %234 = vector.broadcast %cst_45 : f32 to vector<1x128xf32>
    %235 = arith.select %233, %231, %234 : vector<1x128xi1>, vector<1x128xf32>
    %236 = vector.shape_cast %235 : vector<1x128xf32> to vector<1x1x128xf32>
    %cst_46 = arith.constant dense<0.000000e+00> : vector<1xf32>
    %237 = vector.multi_reduction <add>, %236, %cst_46 [1, 2] : vector<1x1x128xf32> to vector<1xf32>
    %238 = vector.shape_cast %237 : vector<1xf32> to vector<1x1x1xf32>
    %239 = vector.extract %238[0, 0, 0] : f32 from vector<1x1x1xf32>
    %240 = math.log %239 : f32
    %241 = arith.subf %226, %240 : f32
    %c16_i32_47 = arith.constant 16 : i32
    %cst_48 = arith.constant 5.000000e-01 : f32
    %242 = arith.mulf %241, %cst_48 : f32
    %c0_49 = arith.constant 0 : index
    %c0_50 = arith.constant 0 : index
    %243 = memref.load %arg3[%c0_49, %c0_50] : memref<1x1xf32, #tpu.memory_space<smem>>
    memref.store %242, %arg3[%c0_49, %c0_50] : memref<1x1xf32, #tpu.memory_space<smem>>
    return
  }
  func.func @transform_0(%arg0: i32, %arg1: memref<16xi32, #tpu.memory_space<smem>>) -> (i32, i32) {
    %c0_i32 = arith.constant 0 : i32
    %c0_i32_0 = arith.constant 0 : i32
    return %arg0, %c0_i32 : i32, i32
  }
  func.func @transform_1(%arg0: i32, %arg1: memref<16xi32, #tpu.memory_space<smem>>) -> (i32, i32) {
    %c0_i32 = arith.constant 0 : i32
    %c0_i32_0 = arith.constant 0 : i32
    return %arg0, %c0_i32 : i32, i32
  }
}

</mosaic_0001>

<llo_original>
// kernel: latex_loss.1
$region0: #{latex_loss.1}
  #allocation0 [shape = 'u32[]', space=smem, size = 0x4, offset = 0x4, fixed_abs, tag = 'smem constant byte address 0x4 - core index']
  #allocation1 [shape = 'u32[144,128]{1,0:T(1,128)}', space=vmem, size = 0x12000, scoped, tag = 'internal scratch']
  #allocation2 [shape = 's32[1]{0}', space=sflag, size = 0x4, scoped, tag = 'scoped memory for latex_loss.1']
  #allocation3 [shape = 'u8[512]{0}', space=smem, size = 0x200, scoped, tag = 'prefetched SMEM operand 0']
  %s0 = inlined_call_operand.vmem [shape: s32[16], index: 0, kind: input, shape index: {}]
  %s1 = inlined_call_operand.hbm [shape: f32[16,128], index: 1, kind: input, shape index: {}]
  %s2 = inlined_call_operand.hbm [shape: f32[1,1], index: 2, kind: output, shape index: {}]
  %s3 = sld [smem:[#allocation0]]
  $region18: #{latex_loss.1} parent=0
    _
  %s5 = ssub.s32 1, %s3
  %s6 = scalar_select 0, %s5, %s3
  %s7 = sshll.u32 %s0, 4
  %s8 = int_to_ptr.vmem [resolvable:$true] %s7
  %10 = dma.vmem_to_smem %s8, 16, [#allocation3], [#allocation2]
  %11 = dma.done [#allocation2], 16
  %12 = sfence
  $region1: #{latex_loss.1} parent=0
    #allocation4 [shape = 'u8[8192]{0}', space=vmem, size = 0x2000, scoped, tag = 'input window, operand 1, single buffered']
    #allocation5 [shape = 's32[1]{0}', space=sflag, size = 0x4, scoped, tag = 'scoped memory for latex_loss.1']
    #allocation6 [shape = 's32[1]{0}', space=sflag, size = 0x4, scoped, tag = 'scoped memory for latex_loss.1']
    #allocation7 [shape = 'u8[512]{0}', space=smem, size = 0x200, scoped, tag = 'output window, operand 0, single buffered']
    %13 = vsyncpa [#allocation5], 0
    %14 = vsyncpa [#allocation6], 0
    // Predicated region
    $region2: #{latex_loss.1} parent=1 // pred_check
      _
    $region3: #{latex_loss.1} parent=1 // pred_check_branch
      %16 = sbr.rel (0) target = $region5
    $region4: #{latex_loss.1} parent=1 // pred_region
      %s18 = ssub.s32 256, 256
      %19 = vsyncadd [#allocation5], %s18
      %s20 = sshll.u32 [#allocation4], 4
      %s21 = int_to_ptr.vmem [resolvable:$true] %s20
      %26 = dma.hbm_to_vmem [thread:$0]  %s1, 256, %s21, [#allocation5], 128, 128, 8
    $region5: #{latex_loss.1} parent=1 // pred_fallthru
      _
    // Predicated region
    $region6: #{latex_loss.1} parent=1 // pred_check
      _
    $region7: #{latex_loss.1} parent=1 // pred_check_branch
      %28 = sbr.rel (0) target = $region9
    $region8: #{latex_loss.1} parent=1 // pred_region
      %29 = dma.done [#allocation5], 256
    $region9: #{latex_loss.1} parent=1 // pred_fallthru
      _
    %s30 = smul.u32 0, 16
    %v31 = vlaneseq
    %v32 = vand.u32 %v31, 127
    %s33 = sld [smem:[#allocation3 + %s30]]
    %v34 = vld [vmem:[#allocation4] sm:$0x1]
    %v35 = vstv %s33
    %vm36 = vcmp.eq.s32.totalorder %v32, %v35
    %v37 = vsel %vm36, %v34, 0.0
    %vm38 = vcmask 1040384
    %v39 = vsel %vm38, %v37, 0.0
    %40 = vadd.xlane.f32.xlu0 %v39
    %v41 = vpop.xlane.xlu0 %40
    %v42 = vrot.slane %v41, 4
    %v43 = vadd.f32 %v41, %v42
    %v44 = vrot.slane %v43, 2
    %v45 = vadd.f32 %v43, %v44
    %v46 = vrot.slane %v45, 1
    %v47 = vadd.f32 %v45, %v46
    %s48 = vtos %v47
    %v49 = vstv %s48
    %v50 = vlog2.pop %v49
    %v51 = vmul.f32 %v50, 0.6931472
    %s52 = vtos %v51
    %s53 = ssub.f32 0.0, %s52
    %s54 = sadd.s32 %s30, 1
    %s55 = sld [smem:[#allocation3 + %s54]]
    %v56 = vld [vmem:[#allocation4 + $0x1] sm:$0x1]
    %v57 = vstv %s55
    %vm58 = vcmp.eq.s32.totalorder %v32, %v57
    %v59 = vsel %vm58, %v56, 0.0
    %v60 = vsel %vm38, %v59, 0.0
    %61 = vadd.xlane.f32.xlu0 %v60
    %v62 = vpop.xlane.xlu0 %61
    %v63 = vrot.slane %v62, 4
    %v64 = vadd.f32 %v62, %v63
    %v65 = vrot.slane %v64, 2
    %v66 = vadd.f32 %v64, %v65
    %v67 = vrot.slane %v66, 1
    %v68 = vadd.f32 %v66, %v67
    %s69 = vtos %v68
    %v70 = vstv %s69
    %v71 = vlog2.pop %v70
    %v72 = vmul.f32 %v71, 0.6931472
    %s73 = vtos %v72
    %s74 = ssub.f32 %s53, %s73
    %s75 = sadd.s32 %s30, 2
    %s76 = sld [smem:[#allocation3 + %s75]]
    %v77 = vld [vmem:[#allocation4 + $0x2] sm:$0x1]
    %v78 = vstv %s76
    %vm79 = vcmp.eq.s32.totalorder %v32, %v78
    %v80 = vsel %vm79, %v77, 0.0
    %v81 = vsel %vm38, %v80, 0.0
    %82 = vadd.xlane.f32.xlu0 %v81
    %v83 = vpop.xlane.xlu0 %82
    %v84 = vrot.slane %v83, 4
    %v85 = vadd.f32 %v83, %v84
    %v86 = vrot.slane %v85, 2
    %v87 = vadd.f32 %v85, %v86
    %v88 = vrot.slane %v87, 1
    %v89 = vadd.f32 %v87, %v88
    %s90 = vtos %v89
    %v91 = vstv %s90
    %v92 = vlog2.pop %v91
    %v93 = vmul.f32 %v92, 0.6931472
    %s94 = vtos %v93
    %s95 = ssub.f32 %s74, %s94
    %s96 = sadd.s32 %s30, 3
    %s97 = sld [smem:[#allocation3 + %s96]]
    %v98 = vld [vmem:[#allocation4 + $0x3] sm:$0x1]
    %v99 = vstv %s97
    %vm100 = vcmp.eq.s32.totalorder %v32, %v99
    %v101 = vsel %vm100, %v98, 0.0
    %v102 = vsel %vm38, %v101, 0.0
    %103 = vadd.xlane.f32.xlu0 %v102
    %v104 = vpop.xlane.xlu0 %103
    %v105 = vrot.slane %v104, 4
    %v106 = vadd.f32 %v104, %v105
    %v107 = vrot.slane %v106, 2
    %v108 = vadd.f32 %v106, %v107
    %v109 = vrot.slane %v108, 1
    %v110 = vadd.f32 %v108, %v109
    %s111 = vtos %v110
    %v112 = vstv %s111
    %v113 = vlog2.pop %v112
    %v114 = vmul.f32 %v113, 0.6931472
    %s115 = vtos %v114
    %s116 = ssub.f32 %s95, %s115
    %s117 = sadd.s32 %s30, 4
    %s118 = sld [smem:[#allocation3 + %s117]]
    %v119 = vld [vmem:[#allocation4 + $0x4] sm:$0x1]
    %v120 = vstv %s118
    %vm121 = vcmp.eq.s32.totalorder %v32, %v120
    %v122 = vsel %vm121, %v119, 0.0
    %v123 = vsel %vm38, %v122, 0.0
    %124 = vadd.xlane.f32.xlu0 %v123
    %v125 = vpop.xlane.xlu0 %124
    %v126 = vrot.slane %v125, 4
    %v127 = vadd.f32 %v125, %v126
    %v128 = vrot.slane %v127, 2
    %v129 = vadd.f32 %v127, %v128
    %v130 = vrot.slane %v129, 1
    %v131 = vadd.f32 %v129, %v130
    %s132 = vtos %v131
    %v133 = vstv %s132
    %v134 = vlog2.pop %v133
    %v135 = vmul.f32 %v134, 0.6931472
    %s136 = vtos %v135
    %s137 = ssub.f32 %s116, %s136
    %s138 = sadd.s32 %s30, 5
    %s139 = sld [smem:[#allocation3 + %s138]]
    %v140 = vld [vmem:[#allocation4 + $0x5] sm:$0x1]
    %v141 = vstv %s139
    %vm142 = vcmp.eq.s32.totalorder %v32, %v141
    %v143 = vsel %vm142, %v140, 0.0
    %v144 = vsel %vm38, %v143, 0.0
    %145 = vadd.xlane.f32.xlu0 %v144
    %v146 = vpop.xlane.xlu0 %145
    %v147 = vrot.slane %v146, 4
    %v148 = vadd.f32 %v146, %v147
    %v149 = vrot.slane %v148, 2
    %v150 = vadd.f32 %v148, %v149
    %v151 = vrot.slane %v150, 1
    %v152 = vadd.f32 %v150, %v151
    %s153 = vtos %v152
    %v154 = vstv %s153
    %v155 = vlog2.pop %v154
    %v156 = vmul.f32 %v155, 0.6931472
    %s157 = vtos %v156
    %s158 = ssub.f32 %s137, %s157
    %s159 = sadd.s32 %s30, 6
    %s160 = sld [smem:[#allocation3 + %s159]]
    %v161 = vld [vmem:[#allocation4 + $0x6] sm:$0x1]
    %v162 = vstv %s160
    %vm163 = vcmp.eq.s32.totalorder %v32, %v162
    %v164 = vsel %vm163, %v161, 0.0
    %v165 = vsel %vm38, %v164, 0.0
    %166 = vadd.xlane.f32.xlu0 %v165
    %v167 = vpop.xlane.xlu0 %166
    %v168 = vrot.slane %v167, 4
    %v169 = vadd.f32 %v167, %v168
    %v170 = vrot.slane %v169, 2
    %v171 = vadd.f32 %v169, %v170
    %v172 = vrot.slane %v171, 1
    %v173 = vadd.f32 %v171, %v172
    %s174 = vtos %v173
    %v175 = vstv %s174
    %v176 = vlog2.pop %v175
    %v177 = vmul.f32 %v176, 0.6931472
    %s178 = vtos %v177
    %s179 = ssub.f32 %s158, %s178
    %s180 = sadd.s32 %s30, 7
    %s181 = sld [smem:[#allocation3 + %s180]]
    %v182 = vld [vmem:[#allocation4 + $0x7] sm:$0x1]
    %v183 = vstv %s181
    %vm184 = vcmp.eq.s32.totalorder %v32, %v183
    %v185 = vsel %vm184, %v182, 0.0
    %v186 = vsel %vm38, %v185, 0.0
    %187 = vadd.xlane.f32.xlu0 %v186
    %v188 = vpop.xlane.xlu0 %187
    %v189 = vrot.slane %v188, 4
    %v190 = vadd.f32 %v188, %v189
    %v191 = vrot.slane %v190, 2
    %v192 = vadd.f32 %v190, %v191
    %v193 = vrot.slane %v192, 1
    %v194 = vadd.f32 %v192, %v193
    %s195 = vtos %v194
    %v196 = vstv %s195
    %v197 = vlog2.pop %v196
    %v198 = vmul.f32 %v197, 0.6931472
    %s199 = vtos %v198
    %s200 = ssub.f32 %s179, %s199
    %s201 = sadd.s32 %s30, 8
    %s202 = sld [smem:[#allocation3 + %s201]]
    %v203 = vld [vmem:[#allocation4 + $0x8] sm:$0x1]
    %v204 = vstv %s202
    %vm205 = vcmp.eq.s32.totalorder %v32, %v204
    %v206 = vsel %vm205, %v203, 0.0
    %v207 = vsel %vm38, %v206, 0.0
    %208 = vadd.xlane.f32.xlu0 %v207
    %v209 = vpop.xlane.xlu0 %208
    %v210 = vrot.slane %v209, 4
    %v211 = vadd.f32 %v209, %v210
    %v212 = vrot.slane %v211, 2
    %v213 = vadd.f32 %v211, %v212
    %v214 = vrot.slane %v213, 1
    %v215 = vadd.f32 %v213, %v214
    %s216 = vtos %v215
    %v217 = vstv %s216
    %v218 = vlog2.pop %v217
    %v219 = vmul.f32 %v218, 0.6931472
    %s220 = vtos %v219
    %s221 = ssub.f32 %s200, %s220
    %s222 = sadd.s32 %s30, 9
    %s223 = sld [smem:[#allocation3 + %s222]]
    %v224 = vld [vmem:[#allocation4 + $0x9] sm:$0x1]
    %v225 = vstv %s223
    %vm226 = vcmp.eq.s32.totalorder %v32, %v225
    %v227 = vsel %vm226, %v224, 0.0
    %v228 = vsel %vm38, %v227, 0.0
    %229 = vadd.xlane.f32.xlu0 %v228
    %v230 = vpop.xlane.xlu0 %229
    %v231 = vrot.slane %v230, 4
    %v232 = vadd.f32 %v230, %v231
    %v233 = vrot.slane %v232, 2
    %v234 = vadd.f32 %v232, %v233
    %v235 = vrot.slane %v234, 1
    %v236 = vadd.f32 %v234, %v235
    %s237 = vtos %v236
    %v238 = vstv %s237
    %v239 = vlog2.pop %v238
    %v240 = vmul.f32 %v239, 0.6931472
    %s241 = vtos %v240
    %s242 = ssub.f32 %s221, %s241
    %s243 = sadd.s32 %s30, 10
    %s244 = sld [smem:[#allocation3 + %s243]]
    %v245 = vld [vmem:[#allocation4 + $0xa] sm:$0x1]
    %v246 = vstv %s244
    %vm247 = vcmp.eq.s32.totalorder %v32, %v246
    %v248 = vsel %vm247, %v245, 0.0
    %v249 = vsel %vm38, %v248, 0.0
    %250 = vadd.xlane.f32.xlu0 %v249
    %v251 = vpop.xlane.xlu0 %250
    %v252 = vrot.slane %v251, 4
    %v253 = vadd.f32 %v251, %v252
    %v254 = vrot.slane %v253, 2
    %v255 = vadd.f32 %v253, %v254
    %v256 = vrot.slane %v255, 1
    %v257 = vadd.f32 %v255, %v256
    %s258 = vtos %v257
    %v259 = vstv %s258
    %v260 = vlog2.pop %v259
    %v261 = vmul.f32 %v260, 0.6931472
    %s262 = vtos %v261
    %s263 = ssub.f32 %s242, %s262
    %s264 = sadd.s32 %s30, 11
    %s265 = sld [smem:[#allocation3 + %s264]]
    %v266 = vld [vmem:[#allocation4 + $0xb] sm:$0x1]
    %v267 = vstv %s265
    %vm268 = vcmp.eq.s32.totalorder %v32, %v267
    %v269 = vsel %vm268, %v266, 0.0
    %v270 = vsel %vm38, %v269, 0.0
    %271 = vadd.xlane.f32.xlu0 %v270
    %v272 = vpop.xlane.xlu0 %271
    %v273 = vrot.slane %v272, 4
    %v274 = vadd.f32 %v272, %v273
    %v275 = vrot.slane %v274, 2
    %v276 = vadd.f32 %v274, %v275
    %v277 = vrot.slane %v276, 1
    %v278 = vadd.f32 %v276, %v277
    %s279 = vtos %v278
    %v280 = vstv %s279
    %v281 = vlog2.pop %v280
    %v282 = vmul.f32 %v281, 0.6931472
    %s283 = vtos %v282
    %s284 = ssub.f32 %s263, %s283
    %s285 = sadd.s32 %s30, 12
    %s286 = sld [smem:[#allocation3 + %s285]]
    %v287 = vld [vmem:[#allocation4 + $0xc] sm:$0x1]
    %v288 = vstv %s286
    %vm289 = vcmp.eq.s32.totalorder %v32, %v288
    %v290 = vsel %vm289, %v287, 0.0
    %v291 = vsel %vm38, %v290, 0.0
    %292 = vadd.xlane.f32.xlu0 %v291
    %v293 = vpop.xlane.xlu0 %292
    %v294 = vrot.slane %v293, 4
    %v295 = vadd.f32 %v293, %v294
    %v296 = vrot.slane %v295, 2
    %v297 = vadd.f32 %v295, %v296
    %v298 = vrot.slane %v297, 1
    %v299 = vadd.f32 %v297, %v298
    %s300 = vtos %v299
    %v301 = vstv %s300
    %v302 = vlog2.pop %v301
    %v303 = vmul.f32 %v302, 0.6931472
    %s304 = vtos %v303
    %s305 = ssub.f32 %s284, %s304
    %s306 = sadd.s32 %s30, 13
    %s307 = sld [smem:[#allocation3 + %s306]]
    %v308 = vld [vmem:[#allocation4 + $0xd] sm:$0x1]
    %v309 = vstv %s307
    %vm310 = vcmp.eq.s32.totalorder %v32, %v309
    %v311 = vsel %vm310, %v308, 0.0
    %v312 = vsel %vm38, %v311, 0.0
    %313 = vadd.xlane.f32.xlu0 %v312
    %v314 = vpop.xlane.xlu0 %313
    %v315 = vrot.slane %v314, 4
    %v316 = vadd.f32 %v314, %v315
    %v317 = vrot.slane %v316, 2
    %v318 = vadd.f32 %v316, %v317
    %v319 = vrot.slane %v318, 1
    %v320 = vadd.f32 %v318, %v319
    %s321 = vtos %v320
    %v322 = vstv %s321
    %v323 = vlog2.pop %v322
    %v324 = vmul.f32 %v323, 0.6931472
    %s325 = vtos %v324
    %s326 = ssub.f32 %s305, %s325
    %s327 = sadd.s32 %s30, 14
    %s328 = sld [smem:[#allocation3 + %s327]]
    %v329 = vld [vmem:[#allocation4 + $0xe] sm:$0x1]
    %v330 = vstv %s328
    %vm331 = vcmp.eq.s32.totalorder %v32, %v330
    %v332 = vsel %vm331, %v329, 0.0
    %v333 = vsel %vm38, %v332, 0.0
    %334 = vadd.xlane.f32.xlu0 %v333
    %v335 = vpop.xlane.xlu0 %334
    %v336 = vrot.slane %v335, 4
    %v337 = vadd.f32 %v335, %v336
    %v338 = vrot.slane %v337, 2
    %v339 = vadd.f32 %v337, %v338
    %v340 = vrot.slane %v339, 1
    %v341 = vadd.f32 %v339, %v340
    %s342 = vtos %v341
    %v343 = vstv %s342
    %v344 = vlog2.pop %v343
    %v345 = vmul.f32 %v344, 0.6931472
    %s346 = vtos %v345
    %s347 = ssub.f32 %s326, %s346
    %s348 = sadd.s32 %s30, 15
    %s349 = sld [smem:[#allocation3 + %s348]]
    %v350 = vld [vmem:[#allocation4 + $0xf] sm:$0x1]
    %v351 = vstv %s349
    %vm352 = vcmp.eq.s32.totalorder %v32, %v351
    %v353 = vsel %vm352, %v350, 0.0
    %v354 = vsel %vm38, %v353, 0.0
    %355 = vadd.xlane.f32.xlu0 %v354
    %v356 = vpop.xlane.xlu0 %355
    %v357 = vrot.slane %v356, 4
    %v358 = vadd.f32 %v356, %v357
    %v359 = vrot.slane %v358, 2
    %v360 = vadd.f32 %v358, %v359
    %v361 = vrot.slane %v360, 1
    %v362 = vadd.f32 %v360, %v361
    %s363 = vtos %v362
    %v364 = vstv %s363
    %v365 = vlog2.pop %v364
    %v366 = vmul.f32 %v365, 0.6931472
    %s367 = vtos %v366
    %s368 = ssub.f32 %s347, %s367
    %s369 = smul.f32 %s368, 0.5
    %s370 = scalar_lea.smem [#allocation7], 0
    %371 = sst [smem:[%s370]] %s369
    // Predicated region
    $region10: #{latex_loss.1} parent=1 // pred_check
      _
    $region11: #{latex_loss.1} parent=1 // pred_check_branch
      %373 = sbr.rel (0) target = $region13
    $region12: #{latex_loss.1} parent=1 // pred_region
      %s375 = ssub.s32 16, 16
      %376 = vsyncadd [#allocation6], %s375
      %379 = dma.smem_to_hbm [#allocation7], 16, %s2, [#allocation6]
    $region13: #{latex_loss.1} parent=1 // pred_fallthru
      _
    // Predicated region
    $region14: #{latex_loss.1} parent=1 // pred_check
      _
    $region15: #{latex_loss.1} parent=1 // pred_check_branch
      %381 = sbr.rel (0) target = $region17
    $region16: #{latex_loss.1} parent=1 // pred_region
      %382 = dma.done [#allocation6], 16
    $region17: #{latex_loss.1} parent=1 // pred_fallthru
      _
    %383 = sfence
    %384 = vsyncpa [#allocation5], 1
    %385 = vsyncpa [#allocation6], 1

</llo_original>
